<compile_context>
chip_gen: v5e
topology: v5e:2x2
jax: 0.10.0
libtpu: 0.0.40
codegen_flags: <defaults>
</compile_context>

<pallas_src>
import math
from functools import partial

import jax
import jax.numpy as jnp
from jax import lax
from jax.experimental import pallas as pl
from jax.experimental.pallas import tpu as pltpu


def _mhsa_kernel(x_ref, y_ref, z_ref,
                 wq_ref, bq_ref, wk_ref, bk_ref, wv_ref, bv_ref,
                 wf_ref, bf_ref,
                 out_ref,
                 concat_ref,
                 *, heads, tokens, emb, masked, precise):
    """Single-invocation body: all heads handled inside, everything in VMEM/vregs."""
    cdt = jnp.float32 if precise else jnp.bfloat16   # MXU operand dtype (f32 accumulation)

    x = x_ref[...].astype(cdt)                       # (T, E)
    y = y_ref[...].astype(cdt)                       # (T, E)
    z = z_ref[...]                                   # (T, E), kept f32 for the residual

    # Head-stacked, lane-dense projections: (T, E) @ (E, H*E) -> (T, H*E), f32 accum,
    # biases added in f32.
    q = jnp.dot(x, wq_ref[...].astype(cdt), preferred_element_type=jnp.float32) + bq_ref[...]
    k = jnp.dot(y, wk_ref[...].astype(cdt), preferred_element_type=jnp.float32) + bk_ref[...]
    v = jnp.dot(z.astype(cdt), wv_ref[...].astype(cdt),
                preferred_element_type=jnp.float32) + bv_ref[...]

    # Fold the softmax 1/sqrt(T) scale into Q once (single lane-dense multiply).
    q = q * jnp.float32(1.0 / math.sqrt(tokens))

    # Cast once for the MXU feeds inside the head loop.
    q = q.astype(cdt)
    k = k.astype(cdt)
    v = v.astype(cdt)

    if masked:
        # Boolean causal mask built once (no persistent f32 -inf tensor live across heads).
        row = lax.broadcasted_iota(jnp.int32, (tokens, tokens), 0)
        col = lax.broadcasted_iota(jnp.int32, (tokens, tokens), 1)
        causal = col > row
        neg = jnp.float32(-1e30)   # finite large negative; exp underflows to exactly 0

    for h in range(heads):                      # heads is a small Python int
        qh = q[:, h * emb:(h + 1) * emb]        # (T, E) static lane slices
        kh = k[:, h * emb:(h + 1) * emb]
        vh = v[:, h * emb:(h + 1) * emb]

        # scores = (q/sqrt(T)) @ k^T, transpose absorbed into the MXU contraction.
        s = lax.dot_general(qh, kh, (((1,), (1,)), ((), ())),
                            preferred_element_type=jnp.float32)        # (T, T) f32
        if masked:
            s = jnp.where(causal, neg, s)

        # Numerically stable softmax over the last dim (matches F.softmax default on 2-D).
        s = s - jnp.max(s, axis=-1, keepdims=True)
        p = jnp.exp(s)
        denom = jnp.sum(p, axis=-1, keepdims=True)
        attn = p * pl.reciprocal(denom, approx=not precise)            # EUP reciprocal

        head_out = jnp.dot(attn.astype(cdt), vh,
                           preferred_element_type=jnp.float32)         # (T, E) f32

        # Sublane-aligned (h*T is a multiple of 8) store into the concat scratch;
        # per-head temporaries die here.
        concat_ref[h * tokens:(h + 1) * tokens, :] = head_out

    # One deep (T, H*T) @ (H*T, E) matmul replaces H shallow per-head accumulations.
    final = jnp.dot(wf_ref[...].astype(cdt), concat_ref[...].astype(cdt),
                    preferred_element_type=jnp.float32) + bf_ref[...]  # (T,1) bcast

    residual = final + z

    # Per-row normalization: (x - mean) / sqrt(std^2 + 1e-4)  (population std).
    mean = jnp.mean(residual, axis=-1, keepdims=True)
    var = jnp.mean((residual - mean) ** 2, axis=-1, keepdims=True)
    out_ref[...] = (residual - mean) * lax.rsqrt(var + 1e-4)           # EUP rsqrt


def multi_headed_self_attention(x, y, z, params, *, masked=False, precise=False):
    wq, bq, wk, bk, wv, bv, wf, bf = params
    T, E = x.shape
    H = wq.shape[0]

    # Fold the head dimension onto the lane axis (layout plumbing, outside the kernel):
    #   (H, E_in, E_out) -> (E_in, H*E_out),  (H, 1, E_out) -> (1, H*E_out)
    wq_s = jnp.transpose(wq, (1, 0, 2)).reshape(E, H * E)
    wk_s = jnp.transpose(wk, (1, 0, 2)).reshape(E, H * E)
    wv_s = jnp.transpose(wv, (1, 0, 2)).reshape(E, H * E)
    bq_s = bq.reshape(1, H * E)
    bk_s = bk.reshape(1, H * E)
    bv_s = bv.reshape(1, H * E)

    kernel = partial(_mhsa_kernel, heads=H, tokens=T, emb=E,
                     masked=masked, precise=precise)

    # Explicit VMEM budget: v5e's scoped default is only 16 MiB (vs 32 MiB v6e/v7x);
    # size to the real footprint with headroom, capped at v7x's 64 MiB physical VMEM.
    f32b = 4
    input_bytes = (3 * T * E + 3 * (E * H * E) + 3 * (H * E) + T * (H * T) + T) * f32b
    scratch_bytes = H * T * E * f32b
    out_bytes = T * E * f32b
    footprint = 2 * (input_bytes + out_bytes) + scratch_bytes     # double-buffered I/O
    vmem_limit = int(min(max(4 * footprint, 32 * 1024 * 1024), 64 * 1024 * 1024))

    return pl.pallas_call(
        kernel,
        out_shape=jax.ShapeDtypeStruct((T, E), jnp.float32),
        grid_spec=pltpu.PrefetchScalarGridSpec(
            num_scalar_prefetch=0,
            grid=(1,),                                       # single invocation
            in_specs=[
                pl.BlockSpec((T, E), lambda i: (0, 0)),      # x
                pl.BlockSpec((T, E), lambda i: (0, 0)),      # y
                pl.BlockSpec((T, E), lambda i: (0, 0)),      # z
                pl.BlockSpec((E, H * E), lambda i: (0, 0)),  # Wq stacked (E, H*E)
                pl.BlockSpec((1, H * E), lambda i: (0, 0)),  # bq stacked
                pl.BlockSpec((E, H * E), lambda i: (0, 0)),  # Wk stacked
                pl.BlockSpec((1, H * E), lambda i: (0, 0)),  # bk stacked
                pl.BlockSpec((E, H * E), lambda i: (0, 0)),  # Wv stacked
                pl.BlockSpec((1, H * E), lambda i: (0, 0)),  # bv stacked
                pl.BlockSpec((T, H * T), lambda i: (0, 0)),  # Wf
                pl.BlockSpec((T, 1), lambda i: (0, 0)),      # bf
            ],
            out_specs=pl.BlockSpec((T, E), lambda i: (0, 0)),
            scratch_shapes=[pltpu.VMEM((H * T, E), jnp.float32)],   # head-concat scratch
        ),
        compiler_params=pltpu.CompilerParams(
            dimension_semantics=("arbitrary",),
            vmem_limit_bytes=vmem_limit),
    )(x, y, z, wq_s, bq_s, wk_s, bk_s, wv_s, bv_s, wf, bf)


def _reference(x, y, z, params, masked=False):
    """Pure-JAX (f32) reproduction of the PyTorch forward for validation."""
    wq, bq, wk, bk, wv, bv, wf, bf = params
    T, _ = x.shape
    H = wq.shape[0]
    outs = []
    for h in range(H):
        tq = x @ wq[h] + bq[h, 0]
        tk = y @ wk[h] + bk[h, 0]
        tv = z @ wv[h] + bv[h, 0]
        att = tq @ tk.T
        if masked:
            att = att + jnp.triu(jnp.full((T, T), -jnp.inf), k=1)
        att = jax.nn.softmax(att / math.sqrt(T), axis=-1)
        outs.append(att @ tv)
    concat = jnp.concatenate(outs, axis=0)
    final = wf @ concat + bf
    residual = final + z
    mean = residual.mean(axis=-1, keepdims=True)
    var = ((residual - mean) ** 2).mean(axis=-1, keepdims=True)
    return (residual - mean) / jnp.sqrt(var + 1e-4)


if __name__ == "__main__":
    HEADS, TOKENS, EMB = 4, 8, 32  # linearDimension == EMB, finalDimension == TOKENS

    key = jax.random.PRNGKey(0)
    ks = jax.random.split(key, 12)
    scale = 1.0 / math.sqrt(EMB)

    # Deterministic synthetic parameters (PyTorch Linear shapes, pre-transposed to (in,out)).
    wq = jax.random.uniform(ks[0], (HEADS, EMB, EMB), jnp.float32, -scale, scale)
    bq = jax.random.uniform(ks[1], (HEADS, 1, EMB), jnp.float32, -scale, scale)
    wk = jax.random.uniform(ks[2], (HEADS, EMB, EMB), jnp.float32, -scale, scale)
    bk = jax.random.uniform(ks[3], (HEADS, 1, EMB), jnp.float32, -scale, scale)
    wv = jax.random.uniform(ks[4], (HEADS, EMB, EMB), jnp.float32, -scale, scale)
    bv = jax.random.uniform(ks[5], (HEADS, 1, EMB), jnp.float32, -scale, scale)
    fscale = 1.0 / math.sqrt(HEADS * TOKENS)
    wf = jax.random.uniform(ks[6], (TOKENS, HEADS * TOKENS), jnp.float32, -fscale, fscale)
    bf = jax.random.uniform(ks[7], (TOKENS, 1), jnp.float32, -fscale, fscale)
    params = (wq, bq, wk, bk, wv, bv, wf, bf)

    x = jax.random.normal(ks[8], (TOKENS, EMB), jnp.float32)
    y = jax.random.normal(ks[9], (TOKENS, EMB), jnp.float32)
    z = jax.random.normal(ks[10], (TOKENS, EMB), jnp.float32)

    for masked in (False, True):
        ref = _reference(x, y, z, params, masked=masked)

        # Precise f32 path: exact-semantics check (same 1e-4 tolerance as before).
        out_p = multi_headed_self_attention(x, y, z, params, masked=masked, precise=True)
        out_p = jax.block_until_ready(out_p)
        assert out_p.shape == (TOKENS, EMB)
        assert jnp.allclose(out_p, ref, atol=1e-4, rtol=1e-4), \
            f"precise path mismatch vs reference (masked={masked})"

        # Default fast path: bf16 MXU operands + approx EUP reciprocal (looser tolerance).
        out_f = multi_headed_self_attention(x, y, z, params, masked=masked)
        out_f = jax.block_until_ready(out_f)
        assert out_f.shape == (TOKENS, EMB)
        assert jnp.allclose(out_f, ref, atol=5e-2, rtol=5e-2), \
            f"bf16 fast path mismatch vs reference (masked={masked})"

    print("KERNEL_OK")
</pallas_src>

<mosaic_0001>
module attributes {stable_mosaic.version = 11 : i64} {
  func.func @_mhsa_kernel(%arg0: i32, %arg1: memref<8x32xf32, #tpu.memory_space<vmem>>, %arg2: memref<8x32xf32, #tpu.memory_space<vmem>>, %arg3: memref<8x32xf32, #tpu.memory_space<vmem>>, %arg4: memref<32x128xf32, #tpu.memory_space<vmem>>, %arg5: memref<1x128xf32, #tpu.memory_space<vmem>>, %arg6: memref<32x128xf32, #tpu.memory_space<vmem>>, %arg7: memref<1x128xf32, #tpu.memory_space<vmem>>, %arg8: memref<32x128xf32, #tpu.memory_space<vmem>>, %arg9: memref<1x128xf32, #tpu.memory_space<vmem>>, %arg10: memref<8x32xf32, #tpu.memory_space<vmem>>, %arg11: memref<8x1xf32, #tpu.memory_space<vmem>>, %arg12: memref<8x32xf32, #tpu.memory_space<vmem>>, %arg13: memref<32x32xf32, #tpu.memory_space<vmem>>) attributes {dimension_semantics = [#tpu.dimension_semantics<arbitrary>], iteration_bounds = array<i64: 1>, scalar_prefetch = 0 : i64, scratch_operands = 1 : i64, tpu.core_type = #tpu.core_type<tc>, window_params = [{pipeline_mode = #tpu.pipeline_mode<synchronous>, transform_indices = @transform_0, window_bounds = array<i64: 8, 32>}, {pipeline_mode = #tpu.pipeline_mode<synchronous>, transform_indices = @transform_1, window_bounds = array<i64: 8, 32>}, {pipeline_mode = #tpu.pipeline_mode<synchronous>, transform_indices = @transform_2, window_bounds = array<i64: 8, 32>}, {pipeline_mode = #tpu.pipeline_mode<synchronous>, transform_indices = @transform_3, window_bounds = array<i64: 32, 128>}, {pipeline_mode = #tpu.pipeline_mode<synchronous>, transform_indices = @transform_4, window_bounds = array<i64: 1, 128>}, {pipeline_mode = #tpu.pipeline_mode<synchronous>, transform_indices = @transform_5, window_bounds = array<i64: 32, 128>}, {pipeline_mode = #tpu.pipeline_mode<synchronous>, transform_indices = @transform_6, window_bounds = array<i64: 1, 128>}, {pipeline_mode = #tpu.pipeline_mode<synchronous>, transform_indices = @transform_7, window_bounds = array<i64: 32, 128>}, {pipeline_mode = #tpu.pipeline_mode<synchronous>, transform_indices = @transform_8, window_bounds = array<i64: 1, 128>}, {pipeline_mode = #tpu.pipeline_mode<synchronous>, transform_indices = @transform_9, window_bounds = array<i64: 8, 32>}, {pipeline_mode = #tpu.pipeline_mode<synchronous>, transform_indices = @transform_10, window_bounds = array<i64: 8, 1>}, {pipeline_mode = #tpu.pipeline_mode<synchronous>, transform_indices = @transform_11, window_bounds = array<i64: 8, 32>}]} {
    %c0 = arith.constant 0 : index
    %c0_0 = arith.constant 0 : index
    %0 = vector.load %arg1[%c0, %c0_0] : memref<8x32xf32, #tpu.memory_space<vmem>>, vector<8x32xf32>
    %c0_1 = arith.constant 0 : index
    %c0_2 = arith.constant 0 : index
    %1 = vector.load %arg2[%c0_1, %c0_2] : memref<8x32xf32, #tpu.memory_space<vmem>>, vector<8x32xf32>
    %c0_3 = arith.constant 0 : index
    %c0_4 = arith.constant 0 : index
    %2 = vector.load %arg3[%c0_3, %c0_4] : memref<8x32xf32, #tpu.memory_space<vmem>>, vector<8x32xf32>
    %c0_5 = arith.constant 0 : index
    %c0_6 = arith.constant 0 : index
    %3 = vector.load %arg4[%c0_5, %c0_6] : memref<32x128xf32, #tpu.memory_space<vmem>>, vector<32x128xf32>
    %cst = arith.constant dense<0.000000e+00> : vector<8x128xf32>
    %4 = tpu.matmul %0, %3, %cst {dimension_numbers = #tpu.dot_dimension_numbers<[1], [0], [0], [1], [0, 0, 1, 1], [], []>} : vector<8x32xf32>, vector<32x128xf32>, vector<8x128xf32> -> vector<8x128xf32>
    %c0_7 = arith.constant 0 : index
    %c0_8 = arith.constant 0 : index
    %5 = vector.load %arg5[%c0_7, %c0_8] : memref<1x128xf32, #tpu.memory_space<vmem>>, vector<1x128xf32>
    %6 = vector.broadcast %5 : vector<1x128xf32> to vector<8x128xf32>
    %7 = arith.addf %4, %6 : vector<8x128xf32>
    %c0_9 = arith.constant 0 : index
    %c0_10 = arith.constant 0 : index
    %8 = vector.load %arg6[%c0_9, %c0_10] : memref<32x128xf32, #tpu.memory_space<vmem>>, vector<32x128xf32>
    %cst_11 = arith.constant dense<0.000000e+00> : vector<8x128xf32>
    %9 = tpu.matmul %1, %8, %cst_11 {dimension_numbers = #tpu.dot_dimension_numbers<[1], [0], [0], [1], [0, 0, 1, 1], [], []>} : vector<8x32xf32>, vector<32x128xf32>, vector<8x128xf32> -> vector<8x128xf32>
    %c0_12 = arith.constant 0 : index
    %c0_13 = arith.constant 0 : index
    %10 = vector.load %arg7[%c0_12, %c0_13] : memref<1x128xf32, #tpu.memory_space<vmem>>, vector<1x128xf32>
    %11 = vector.broadcast %10 : vector<1x128xf32> to vector<8x128xf32>
    %12 = arith.addf %9, %11 : vector<8x128xf32>
    %c0_14 = arith.constant 0 : index
    %c0_15 = arith.constant 0 : index
    %13 = vector.load %arg8[%c0_14, %c0_15] : memref<32x128xf32, #tpu.memory_space<vmem>>, vector<32x128xf32>
    %cst_16 = arith.constant dense<0.000000e+00> : vector<8x128xf32>
    %14 = tpu.matmul %2, %13, %cst_16 {dimension_numbers = #tpu.dot_dimension_numbers<[1], [0], [0], [1], [0, 0, 1, 1], [], []>} : vector<8x32xf32>, vector<32x128xf32>, vector<8x128xf32> -> vector<8x128xf32>
    %c0_17 = arith.constant 0 : index
    %c0_18 = arith.constant 0 : index
    %15 = vector.load %arg9[%c0_17, %c0_18] : memref<1x128xf32, #tpu.memory_space<vmem>>, vector<1x128xf32>
    %16 = vector.broadcast %15 : vector<1x128xf32> to vector<8x128xf32>
    %17 = arith.addf %14, %16 : vector<8x128xf32>
    %cst_19 = arith.constant 0.353553385 : f32
    %18 = vector.broadcast %cst_19 : f32 to vector<8x128xf32>
    %19 = arith.mulf %7, %18 : vector<8x128xf32>
    %20 = vector.extract_strided_slice %19 {offsets = [0, 0], sizes = [8, 32], strides = [1, 1]} : vector<8x128xf32> to vector<8x32xf32>
    %21 = vector.extract_strided_slice %12 {offsets = [0, 0], sizes = [8, 32], strides = [1, 1]} : vector<8x128xf32> to vector<8x32xf32>
    %22 = vector.extract_strided_slice %17 {offsets = [0, 0], sizes = [8, 32], strides = [1, 1]} : vector<8x128xf32> to vector<8x32xf32>
    %cst_20 = arith.constant dense<0.000000e+00> : vector<8x8xf32>
    %23 = tpu.matmul %20, %21, %cst_20 {dimension_numbers = #tpu.dot_dimension_numbers<[1], [1], [0], [0], [0, 0, 1, 0], [], []>} : vector<8x32xf32>, vector<8x32xf32>, vector<8x8xf32> -> vector<8x8xf32>
    %cst_21 = arith.constant dense<0xFF800000> : vector<8xf32>
    %24 = vector.multi_reduction <maximumf>, %23, %cst_21 [1] : vector<8x8xf32> to vector<8xf32>
    %25 = vector.shape_cast %24 : vector<8xf32> to vector<8x1xf32>
    %26 = vector.broadcast %25 : vector<8x1xf32> to vector<8x8xf32>
    %27 = arith.subf %23, %26 : vector<8x8xf32>
    %28 = math.exp %27 : vector<8x8xf32>
    %cst_22 = arith.constant dense<0.000000e+00> : vector<8xf32>
    %29 = vector.multi_reduction <add>, %28, %cst_22 [1] : vector<8x8xf32> to vector<8xf32>
    %30 = vector.shape_cast %29 : vector<8xf32> to vector<8x1xf32>
    %31 = tpu.reciprocal %30 : vector<8x1xf32> -> vector<8x1xf32>
    %32 = vector.broadcast %31 : vector<8x1xf32> to vector<8x8xf32>
    %33 = arith.mulf %28, %32 : vector<8x8xf32>
    %cst_23 = arith.constant dense<0.000000e+00> : vector<8x32xf32>
    %34 = tpu.matmul %33, %22, %cst_23 {dimension_numbers = #tpu.dot_dimension_numbers<[1], [0], [0], [1], [0, 0, 1, 1], [], []>} : vector<8x8xf32>, vector<8x32xf32>, vector<8x32xf32> -> vector<8x32xf32>
    %c0_24 = arith.constant 0 : index
    %c0_25 = arith.constant 0 : index
    %35 = vector.load %arg13[%c0_24, %c0_25] : memref<32x32xf32, #tpu.memory_space<vmem>>, vector<8x32xf32>
    tpu.vector_store %arg13[%c0_24, %c0_25], %34 {strides = array<i32>} : memref<32x32xf32, #tpu.memory_space<vmem>>, vector<8x32xf32>,
    %36 = vector.extract_strided_slice %19 {offsets = [0, 32], sizes = [8, 32], strides = [1, 1]} : vector<8x128xf32> to vector<8x32xf32>
    %37 = vector.extract_strided_slice %12 {offsets = [0, 32], sizes = [8, 32], strides = [1, 1]} : vector<8x128xf32> to vector<8x32xf32>
    %38 = vector.extract_strided_slice %17 {offsets = [0, 32], sizes = [8, 32], strides = [1, 1]} : vector<8x128xf32> to vector<8x32xf32>
    %cst_26 = arith.constant dense<0.000000e+00> : vector<8x8xf32>
    %39 = tpu.matmul %36, %37, %cst_26 {dimension_numbers = #tpu.dot_dimension_numbers<[1], [1], [0], [0], [0, 0, 1, 0], [], []>} : vector<8x32xf32>, vector<8x32xf32>, vector<8x8xf32> -> vector<8x8xf32>
    %cst_27 = arith.constant dense<0xFF800000> : vector<8xf32>
    %40 = vector.multi_reduction <maximumf>, %39, %cst_27 [1] : vector<8x8xf32> to vector<8xf32>
    %41 = vector.shape_cast %40 : vector<8xf32> to vector<8x1xf32>
    %42 = vector.broadcast %41 : vector<8x1xf32> to vector<8x8xf32>
    %43 = arith.subf %39, %42 : vector<8x8xf32>
    %44 = math.exp %43 : vector<8x8xf32>
    %cst_28 = arith.constant dense<0.000000e+00> : vector<8xf32>
    %45 = vector.multi_reduction <add>, %44, %cst_28 [1] : vector<8x8xf32> to vector<8xf32>
    %46 = vector.shape_cast %45 : vector<8xf32> to vector<8x1xf32>
    %47 = tpu.reciprocal %46 : vector<8x1xf32> -> vector<8x1xf32>
    %48 = vector.broadcast %47 : vector<8x1xf32> to vector<8x8xf32>
    %49 = arith.mulf %44, %48 : vector<8x8xf32>
    %cst_29 = arith.constant dense<0.000000e+00> : vector<8x32xf32>
    %50 = tpu.matmul %49, %38, %cst_29 {dimension_numbers = #tpu.dot_dimension_numbers<[1], [0], [0], [1], [0, 0, 1, 1], [], []>} : vector<8x8xf32>, vector<8x32xf32>, vector<8x32xf32> -> vector<8x32xf32>
    %c8 = arith.constant 8 : index
    %c0_30 = arith.constant 0 : index
    %51 = vector.load %arg13[%c8, %c0_30] : memref<32x32xf32, #tpu.memory_space<vmem>>, vector<8x32xf32>
    tpu.vector_store %arg13[%c8, %c0_30], %50 {strides = array<i32>} : memref<32x32xf32, #tpu.memory_space<vmem>>, vector<8x32xf32>,
    %52 = vector.extract_strided_slice %19 {offsets = [0, 64], sizes = [8, 32], strides = [1, 1]} : vector<8x128xf32> to vector<8x32xf32>
    %53 = vector.extract_strided_slice %12 {offsets = [0, 64], sizes = [8, 32], strides = [1, 1]} : vector<8x128xf32> to vector<8x32xf32>
    %54 = vector.extract_strided_slice %17 {offsets = [0, 64], sizes = [8, 32], strides = [1, 1]} : vector<8x128xf32> to vector<8x32xf32>
    %cst_31 = arith.constant dense<0.000000e+00> : vector<8x8xf32>
    %55 = tpu.matmul %52, %53, %cst_31 {dimension_numbers = #tpu.dot_dimension_numbers<[1], [1], [0], [0], [0, 0, 1, 0], [], []>} : vector<8x32xf32>, vector<8x32xf32>, vector<8x8xf32> -> vector<8x8xf32>
    %cst_32 = arith.constant dense<0xFF800000> : vector<8xf32>
    %56 = vector.multi_reduction <maximumf>, %55, %cst_32 [1] : vector<8x8xf32> to vector<8xf32>
    %57 = vector.shape_cast %56 : vector<8xf32> to vector<8x1xf32>
    %58 = vector.broadcast %57 : vector<8x1xf32> to vector<8x8xf32>
    %59 = arith.subf %55, %58 : vector<8x8xf32>
    %60 = math.exp %59 : vector<8x8xf32>
    %cst_33 = arith.constant dense<0.000000e+00> : vector<8xf32>
    %61 = vector.multi_reduction <add>, %60, %cst_33 [1] : vector<8x8xf32> to vector<8xf32>
    %62 = vector.shape_cast %61 : vector<8xf32> to vector<8x1xf32>
    %63 = tpu.reciprocal %62 : vector<8x1xf32> -> vector<8x1xf32>
    %64 = vector.broadcast %63 : vector<8x1xf32> to vector<8x8xf32>
    %65 = arith.mulf %60, %64 : vector<8x8xf32>
    %cst_34 = arith.constant dense<0.000000e+00> : vector<8x32xf32>
    %66 = tpu.matmul %65, %54, %cst_34 {dimension_numbers = #tpu.dot_dimension_numbers<[1], [0], [0], [1], [0, 0, 1, 1], [], []>} : vector<8x8xf32>, vector<8x32xf32>, vector<8x32xf32> -> vector<8x32xf32>
    %c16 = arith.constant 16 : index
    %c0_35 = arith.constant 0 : index
    %67 = vector.load %arg13[%c16, %c0_35] : memref<32x32xf32, #tpu.memory_space<vmem>>, vector<8x32xf32>
    tpu.vector_store %arg13[%c16, %c0_35], %66 {strides = array<i32>} : memref<32x32xf32, #tpu.memory_space<vmem>>, vector<8x32xf32>,
    %68 = vector.extract_strided_slice %19 {offsets = [0, 96], sizes = [8, 32], strides = [1, 1]} : vector<8x128xf32> to vector<8x32xf32>
    %69 = vector.extract_strided_slice %12 {offsets = [0, 96], sizes = [8, 32], strides = [1, 1]} : vector<8x128xf32> to vector<8x32xf32>
    %70 = vector.extract_strided_slice %17 {offsets = [0, 96], sizes = [8, 32], strides = [1, 1]} : vector<8x128xf32> to vector<8x32xf32>
    %cst_36 = arith.constant dense<0.000000e+00> : vector<8x8xf32>
    %71 = tpu.matmul %68, %69, %cst_36 {dimension_numbers = #tpu.dot_dimension_numbers<[1], [1], [0], [0], [0, 0, 1, 0], [], []>} : vector<8x32xf32>, vector<8x32xf32>, vector<8x8xf32> -> vector<8x8xf32>
    %cst_37 = arith.constant dense<0xFF800000> : vector<8xf32>
    %72 = vector.multi_reduction <maximumf>, %71, %cst_37 [1] : vector<8x8xf32> to vector<8xf32>
    %73 = vector.shape_cast %72 : vector<8xf32> to vector<8x1xf32>
    %74 = vector.broadcast %73 : vector<8x1xf32> to vector<8x8xf32>
    %75 = arith.subf %71, %74 : vector<8x8xf32>
    %76 = math.exp %75 : vector<8x8xf32>
    %cst_38 = arith.constant dense<0.000000e+00> : vector<8xf32>
    %77 = vector.multi_reduction <add>, %76, %cst_38 [1] : vector<8x8xf32> to vector<8xf32>
    %78 = vector.shape_cast %77 : vector<8xf32> to vector<8x1xf32>
    %79 = tpu.reciprocal %78 : vector<8x1xf32> -> vector<8x1xf32>
    %80 = vector.broadcast %79 : vector<8x1xf32> to vector<8x8xf32>
    %81 = arith.mulf %76, %80 : vector<8x8xf32>
    %cst_39 = arith.constant dense<0.000000e+00> : vector<8x32xf32>
    %82 = tpu.matmul %81, %70, %cst_39 {dimension_numbers = #tpu.dot_dimension_numbers<[1], [0], [0], [1], [0, 0, 1, 1], [], []>} : vector<8x8xf32>, vector<8x32xf32>, vector<8x32xf32> -> vector<8x32xf32>
    %c24 = arith.constant 24 : index
    %c0_40 = arith.constant 0 : index
    %83 = vector.load %arg13[%c24, %c0_40] : memref<32x32xf32, #tpu.memory_space<vmem>>, vector<8x32xf32>
    tpu.vector_store %arg13[%c24, %c0_40], %82 {strides = array<i32>} : memref<32x32xf32, #tpu.memory_space<vmem>>, vector<8x32xf32>,
    %c0_41 = arith.constant 0 : index
    %c0_42 = arith.constant 0 : index
    %84 = vector.load %arg10[%c0_41, %c0_42] : memref<8x32xf32, #tpu.memory_space<vmem>>, vector<8x32xf32>
    %c0_43 = arith.constant 0 : index
    %c0_44 = arith.constant 0 : index
    %85 = vector.load %arg13[%c0_43, %c0_44] : memref<32x32xf32, #tpu.memory_space<vmem>>, vector<32x32xf32>
    %cst_45 = arith.constant dense<0.000000e+00> : vector<8x32xf32>
    %86 = tpu.matmul %84, %85, %cst_45 {dimension_numbers = #tpu.dot_dimension_numbers<[1], [0], [0], [1], [0, 0, 1, 1], [], []>} : vector<8x32xf32>, vector<32x32xf32>, vector<8x32xf32> -> vector<8x32xf32>
    %c0_46 = arith.constant 0 : index
    %c0_47 = arith.constant 0 : index
    %87 = vector.load %arg11[%c0_46, %c0_47] : memref<8x1xf32, #tpu.memory_space<vmem>>, vector<8x1xf32>
    %88 = vector.broadcast %87 : vector<8x1xf32> to vector<8x32xf32>
    %89 = arith.addf %86, %88 : vector<8x32xf32>
    %90 = arith.addf %89, %2 : vector<8x32xf32>
    %cst_48 = arith.constant dense<0.000000e+00> : vector<8xf32>
    %91 = vector.multi_reduction <add>, %90, %cst_48 [1] : vector<8x32xf32> to vector<8xf32>
    %92 = vector.shape_cast %91 : vector<8xf32> to vector<8x1xf32>
    %cst_49 = arith.constant 3.200000e+01 : f32
    %93 = vector.broadcast %cst_49 : f32 to vector<8x1xf32>
    %94 = arith.divf %92, %93 : vector<8x1xf32>
    %95 = vector.broadcast %94 : vector<8x1xf32> to vector<8x32xf32>
    %96 = arith.subf %90, %95 : vector<8x32xf32>
    %97 = arith.mulf %96, %96 : vector<8x32xf32>
    %cst_50 = arith.constant dense<0.000000e+00> : vector<8xf32>
    %98 = vector.multi_reduction <add>, %97, %cst_50 [1] : vector<8x32xf32> to vector<8xf32>
    %99 = vector.shape_cast %98 : vector<8xf32> to vector<8x1xf32>
    %cst_51 = arith.constant 3.200000e+01 : f32
    %100 = vector.broadcast %cst_51 : f32 to vector<8x1xf32>
    %101 = arith.divf %99, %100 : vector<8x1xf32>
    %102 = vector.broadcast %94 : vector<8x1xf32> to vector<8x32xf32>
    %103 = arith.subf %90, %102 : vector<8x32xf32>
    %cst_52 = arith.constant 9.99999974E-5 : f32
    %104 = vector.broadcast %cst_52 : f32 to vector<8x1xf32>
    %105 = arith.addf %101, %104 : vector<8x1xf32>
    %106 = math.rsqrt %105 : vector<8x1xf32>
    %107 = vector.broadcast %106 : vector<8x1xf32> to vector<8x32xf32>
    %108 = arith.mulf %103, %107 : vector<8x32xf32>
    %c0_53 = arith.constant 0 : index
    %c0_54 = arith.constant 0 : index
    %109 = vector.load %arg12[%c0_53, %c0_54] : memref<8x32xf32, #tpu.memory_space<vmem>>, vector<8x32xf32>
    tpu.vector_store %arg12[%c0_53, %c0_54], %108 {strides = array<i32>} : memref<8x32xf32, #tpu.memory_space<vmem>>, vector<8x32xf32>,
    return
  }
  func.func @transform_0(%arg0: i32) -> (i32, i32) {
    %c0_i32 = arith.constant 0 : i32
    %c0_i32_0 = arith.constant 0 : i32
    %c0_i32_1 = arith.constant 0 : i32
    return %c0_i32, %c0_i32_0 : i32, i32
  }
  func.func @transform_1(%arg0: i32) -> (i32, i32) {
    %c0_i32 = arith.constant 0 : i32
    %c0_i32_0 = arith.constant 0 : i32
    %c0_i32_1 = arith.constant 0 : i32
    return %c0_i32, %c0_i32_0 : i32, i32
  }
  func.func @transform_2(%arg0: i32) -> (i32, i32) {
    %c0_i32 = arith.constant 0 : i32
    %c0_i32_0 = arith.constant 0 : i32
    %c0_i32_1 = arith.constant 0 : i32
    return %c0_i32, %c0_i32_0 : i32, i32
  }
  func.func @transform_3(%arg0: i32) -> (i32, i32) {
    %c0_i32 = arith.constant 0 : i32
    %c0_i32_0 = arith.constant 0 : i32
    %c0_i32_1 = arith.constant 0 : i32
    return %c0_i32, %c0_i32_0 : i32, i32
  }
  func.func @transform_4(%arg0: i32) -> (i32, i32) {
    %c0_i32 = arith.constant 0 : i32
    %c0_i32_0 = arith.constant 0 : i32
    %c0_i32_1 = arith.constant 0 : i32
    return %c0_i32, %c0_i32_0 : i32, i32
  }
  func.func @transform_5(%arg0: i32) -> (i32, i32) {
    %c0_i32 = arith.constant 0 : i32
    %c0_i32_0 = arith.constant 0 : i32
    %c0_i32_1 = arith.constant 0 : i32
    return %c0_i32, %c0_i32_0 : i32, i32
  }
  func.func @transform_6(%arg0: i32) -> (i32, i32) {
    %c0_i32 = arith.constant 0 : i32
    %c0_i32_0 = arith.constant 0 : i32
    %c0_i32_1 = arith.constant 0 : i32
    return %c0_i32, %c0_i32_0 : i32, i32
  }
  func.func @transform_7(%arg0: i32) -> (i32, i32) {
    %c0_i32 = arith.constant 0 : i32
    %c0_i32_0 = arith.constant 0 : i32
    %c0_i32_1 = arith.constant 0 : i32
    return %c0_i32, %c0_i32_0 : i32, i32
  }
  func.func @transform_8(%arg0: i32) -> (i32, i32) {
    %c0_i32 = arith.constant 0 : i32
    %c0_i32_0 = arith.constant 0 : i32
    %c0_i32_1 = arith.constant 0 : i32
    return %c0_i32, %c0_i32_0 : i32, i32
  }
  func.func @transform_9(%arg0: i32) -> (i32, i32) {
    %c0_i32 = arith.constant 0 : i32
    %c0_i32_0 = arith.constant 0 : i32
    %c0_i32_1 = arith.constant 0 : i32
    return %c0_i32, %c0_i32_0 : i32, i32
  }
  func.func @transform_10(%arg0: i32) -> (i32, i32) {
    %c0_i32 = arith.constant 0 : i32
    %c0_i32_0 = arith.constant 0 : i32
    %c0_i32_1 = arith.constant 0 : i32
    return %c0_i32, %c0_i32_0 : i32, i32
  }
  func.func @transform_11(%arg0: i32) -> (i32, i32) {
    %c0_i32 = arith.constant 0 : i32
    %c0_i32_0 = arith.constant 0 : i32
    %c0_i32_1 = arith.constant 0 : i32
    return %c0_i32, %c0_i32_0 : i32, i32
  }
}

</mosaic_0001>

<llo_original>
// kernel: tpu_custom_call.1
$region0: #{tpu_custom_call.1}
  #allocation0 [shape = 'u32[]', space=smem, size = 0x4, offset = 0x4, fixed_abs, tag = 'smem constant byte address 0x4 - core index']
  #allocation1 [shape = 'u32[72,128]{1,0:T(1,128)}', space=vmem, size = 0x9000, scoped, tag = 'internal scratch']
  #allocation2 [shape = 'f32[32,32]{1,0:T(8,128)}', space=vmem, size = 0x4000, scoped, tag = 'scratch operand']
  %s0 = inlined_call_operand.vmem [shape: f32[8,32], index: 0, kind: input, shape index: {}]
  %s1 = inlined_call_operand.hbm [shape: f32[8,32], index: 1, kind: input, shape index: {}]
  %s2 = inlined_call_operand.hbm [shape: f32[8,32], index: 2, kind: input, shape index: {}]
  %s3 = inlined_call_operand.hbm [shape: f32[32,128], index: 3, kind: input, shape index: {}]
  %s4 = inlined_call_operand.vmem [shape: f32[1,128], index: 4, kind: input, shape index: {}]
  %s5 = inlined_call_operand.hbm [shape: f32[32,128], index: 5, kind: input, shape index: {}]
  %s6 = inlined_call_operand.vmem [shape: f32[1,128], index: 6, kind: input, shape index: {}]
  %s7 = inlined_call_operand.hbm [shape: f32[32,128], index: 7, kind: input, shape index: {}]
  %s8 = inlined_call_operand.vmem [shape: f32[1,128], index: 8, kind: input, shape index: {}]
  %s9 = inlined_call_operand.hbm [shape: f32[8,32], index: 9, kind: input, shape index: {}]
  %s10 = inlined_call_operand.vmem [shape: f32[8,1], index: 10, kind: input, shape index: {}]
  %s11 = inlined_call_operand.hbm [shape: f32[8,32], index: 11, kind: output, shape index: {}]
  %s12 = sld [smem:[#allocation0]]
  $region78: #{tpu_custom_call.1} parent=0
    _
  %s14 = ssub.s32 1, %s12
  %s15 = scalar_select 0, %s14, %s12
  $region1: #{tpu_custom_call.1} parent=0
    #allocation3 [shape = 'u8[4096]{0}', space=vmem, size = 0x1000, scoped, tag = 'input window, operand 1, single buffered']
    #allocation4 [shape = 's32[1]{0}', space=sflag, size = 0x4, scoped, tag = 'scoped memory for tpu_custom_call.1']
    #allocation5 [shape = 's32[1]{0}', space=sflag, size = 0x4, scoped, tag = 'scoped memory for tpu_custom_call.1']
    #allocation6 [shape = 'u8[4096]{0}', space=vmem, size = 0x1000, scoped, tag = 'input window, operand 2, single buffered']
    #allocation7 [shape = 's32[1]{0}', space=sflag, size = 0x4, scoped, tag = 'scoped memory for tpu_custom_call.1']
    #allocation8 [shape = 'u8[16384]{0}', space=vmem, size = 0x4000, scoped, tag = 'input window, operand 3, single buffered']
    #allocation9 [shape = 'u8[16384]{0}', space=vmem, size = 0x4000, scoped, tag = 'input window, operand 5, single buffered']
    #allocation10 [shape = 's32[1]{0}', space=sflag, size = 0x4, scoped, tag = 'scoped memory for tpu_custom_call.1']
    #allocation11 [shape = 'u8[16384]{0}', space=vmem, size = 0x4000, scoped, tag = 'input window, operand 7, single buffered']
    #allocation12 [shape = 'u8[4096]{0}', space=vmem, size = 0x1000, scoped, tag = 'input window, operand 9, single buffered']
    #allocation13 [shape = 's32[1]{0}', space=sflag, size = 0x4, scoped, tag = 'scoped memory for tpu_custom_call.1']
    #allocation14 [shape = 'u8[4096]{0}', space=vmem, size = 0x1000, scoped, tag = 'output window, operand 0, single buffered']
    %16 = vsyncpa [#allocation4], 0
    %17 = vsyncpa [#allocation7], 0
    %18 = vsyncpa [#allocation10], 0
    %19 = vsyncpa [#allocation13], 0
    %20 = vsyncpa [#allocation5], 0
    // Predicated region
    $region2: #{tpu_custom_call.1} parent=1 // pred_check
      _
    $region3: #{tpu_custom_call.1} parent=1 // pred_check_branch
      %22 = sbr.rel (0) target = $region5
    $region4: #{tpu_custom_call.1} parent=1 // pred_region
      _
    $region5: #{tpu_custom_call.1} parent=1 // pred_fallthru
      _
    // Predicated region
    $region6: #{tpu_custom_call.1} parent=1 // pred_check
      _
    $region7: #{tpu_custom_call.1} parent=1 // pred_check_branch
      %24 = sbr.rel (0) target = $region9
    $region8: #{tpu_custom_call.1} parent=1 // pred_region
      %26 = vsyncadd [#allocation4], 0
      %s28 = sshll.u32 %s1, 4
      %s29 = int_to_ptr.hbm [resolvable:$true] %s28
      %s30 = sshll.u32 [#allocation3], 4
      %s31 = int_to_ptr.vmem [resolvable:$true] %s30
      %33 = dma.hbm_to_vmem [thread:$0]  %s29, 128, %s31, [#allocation4]
    $region9: #{tpu_custom_call.1} parent=1 // pred_fallthru
      _
    // Predicated region
    $region10: #{tpu_custom_call.1} parent=1 // pred_check
      _
    $region11: #{tpu_custom_call.1} parent=1 // pred_check_branch
      %35 = sbr.rel (0) target = $region13
    $region12: #{tpu_custom_call.1} parent=1 // pred_region
      %37 = vsyncadd [#allocation7], 0
      %s39 = sshll.u32 %s2, 4
      %s40 = int_to_ptr.hbm [resolvable:$true] %s39
      %s41 = sshll.u32 [#allocation6], 4
      %s42 = int_to_ptr.vmem [resolvable:$true] %s41
      %44 = dma.hbm_to_vmem [thread:$0]  %s40, 128, %s42, [#allocation7]
    $region13: #{tpu_custom_call.1} parent=1 // pred_fallthru
      _
    // Predicated region
    $region14: #{tpu_custom_call.1} parent=1 // pred_check
      _
    $region15: #{tpu_custom_call.1} parent=1 // pred_check_branch
      %46 = sbr.rel (0) target = $region17
    $region16: #{tpu_custom_call.1} parent=1 // pred_region
      %48 = vsyncadd [#allocation7], 0
      %s49 = sshll.u32 %s3, 4
      %s50 = int_to_ptr.hbm [resolvable:$true] %s49
      %s51 = sshll.u32 [#allocation8], 4
      %s52 = int_to_ptr.vmem [resolvable:$true] %s51
      %57 = dma.hbm_to_vmem [thread:$0]  %s50, 512, %s52, [#allocation7], 128, 128, 8
    $region17: #{tpu_custom_call.1} parent=1 // pred_fallthru
      _
    // Predicated region
    $region18: #{tpu_custom_call.1} parent=1 // pred_check
      _
    $region19: #{tpu_custom_call.1} parent=1 // pred_check_branch
      %59 = sbr.rel (0) target = $region21
    $region20: #{tpu_custom_call.1} parent=1 // pred_region
      _
    $region21: #{tpu_custom_call.1} parent=1 // pred_fallthru
      _
    // Predicated region
    $region22: #{tpu_custom_call.1} parent=1 // pred_check
      _
    $region23: #{tpu_custom_call.1} parent=1 // pred_check_branch
      %61 = sbr.rel (0) target = $region25
    $region24: #{tpu_custom_call.1} parent=1 // pred_region
      %63 = vsyncadd [#allocation10], 0
      %s64 = sshll.u32 %s5, 4
      %s65 = int_to_ptr.hbm [resolvable:$true] %s64
      %s66 = sshll.u32 [#allocation9], 4
      %s67 = int_to_ptr.vmem [resolvable:$true] %s66
      %72 = dma.hbm_to_vmem [thread:$0]  %s65, 512, %s67, [#allocation10], 128, 128, 8
    $region25: #{tpu_custom_call.1} parent=1 // pred_fallthru
      _
    // Predicated region
    $region26: #{tpu_custom_call.1} parent=1 // pred_check
      _
    $region27: #{tpu_custom_call.1} parent=1 // pred_check_branch
      %74 = sbr.rel (0) target = $region29
    $region28: #{tpu_custom_call.1} parent=1 // pred_region
      _
    $region29: #{tpu_custom_call.1} parent=1 // pred_fallthru
      _
    // Predicated region
    $region30: #{tpu_custom_call.1} parent=1 // pred_check
      _
    $region31: #{tpu_custom_call.1} parent=1 // pred_check_branch
      %76 = sbr.rel (0) target = $region33
    $region32: #{tpu_custom_call.1} parent=1 // pred_region
      %78 = vsyncadd [#allocation10], 0
      %s79 = sshll.u32 %s7, 4
      %s80 = int_to_ptr.hbm [resolvable:$true] %s79
      %s81 = sshll.u32 [#allocation11], 4
      %s82 = int_to_ptr.vmem [resolvable:$true] %s81
      %87 = dma.hbm_to_vmem [thread:$0]  %s80, 512, %s82, [#allocation10], 128, 128, 8
    $region33: #{tpu_custom_call.1} parent=1 // pred_fallthru
      _
    // Predicated region
    $region34: #{tpu_custom_call.1} parent=1 // pred_check
      _
    $region35: #{tpu_custom_call.1} parent=1 // pred_check_branch
      %89 = sbr.rel (0) target = $region37
    $region36: #{tpu_custom_call.1} parent=1 // pred_region
      _
    $region37: #{tpu_custom_call.1} parent=1 // pred_fallthru
      _
    // Predicated region
    $region38: #{tpu_custom_call.1} parent=1 // pred_check
      _
    $region39: #{tpu_custom_call.1} parent=1 // pred_check_branch
      %91 = sbr.rel (0) target = $region41
    $region40: #{tpu_custom_call.1} parent=1 // pred_region
      %93 = vsyncadd [#allocation13], 0
      %s95 = sshll.u32 %s9, 4
      %s96 = int_to_ptr.hbm [resolvable:$true] %s95
      %s97 = sshll.u32 [#allocation12], 4
      %s98 = int_to_ptr.vmem [resolvable:$true] %s97
      %100 = dma.hbm_to_vmem [thread:$0]  %s96, 128, %s98, [#allocation13]
    $region41: #{tpu_custom_call.1} parent=1 // pred_fallthru
      _
    // Predicated region
    $region42: #{tpu_custom_call.1} parent=1 // pred_check
      _
    $region43: #{tpu_custom_call.1} parent=1 // pred_check_branch
      %102 = sbr.rel (0) target = $region45
    $region44: #{tpu_custom_call.1} parent=1 // pred_region
      _
    $region45: #{tpu_custom_call.1} parent=1 // pred_fallthru
      _
    // Predicated region
    $region46: #{tpu_custom_call.1} parent=1 // pred_check
      _
    $region47: #{tpu_custom_call.1} parent=1 // pred_check_branch
      %104 = sbr.rel (0) target = $region49
    $region48: #{tpu_custom_call.1} parent=1 // pred_region
      %106 = dma.done [#allocation4], 128
    $region49: #{tpu_custom_call.1} parent=1 // pred_fallthru
      _
    // Predicated region
    $region50: #{tpu_custom_call.1} parent=1 // pred_check
      _
    $region51: #{tpu_custom_call.1} parent=1 // pred_check_branch
      %108 = sbr.rel (0) target = $region53
    $region52: #{tpu_custom_call.1} parent=1 // pred_region
      %110 = dma.done [#allocation7], 128
    $region53: #{tpu_custom_call.1} parent=1 // pred_fallthru
      _
    // Predicated region
    $region54: #{tpu_custom_call.1} parent=1 // pred_check
      _
    $region55: #{tpu_custom_call.1} parent=1 // pred_check_branch
      %112 = sbr.rel (0) target = $region57
    $region56: #{tpu_custom_call.1} parent=1 // pred_region
      %114 = dma.done [#allocation7], 512
    $region57: #{tpu_custom_call.1} parent=1 // pred_fallthru
      _
    // Predicated region
    $region58: #{tpu_custom_call.1} parent=1 // pred_check
      _
    $region59: #{tpu_custom_call.1} parent=1 // pred_check_branch
      %116 = sbr.rel (0) target = $region61
    $region60: #{tpu_custom_call.1} parent=1 // pred_region
      %118 = dma.done [#allocation10], 512
    $region61: #{tpu_custom_call.1} parent=1 // pred_fallthru
      _
    // Predicated region
    $region62: #{tpu_custom_call.1} parent=1 // pred_check
      _
    $region63: #{tpu_custom_call.1} parent=1 // pred_check_branch
      %120 = sbr.rel (0) target = $region65
    $region64: #{tpu_custom_call.1} parent=1 // pred_region
      %122 = dma.done [#allocation10], 512
    $region65: #{tpu_custom_call.1} parent=1 // pred_fallthru
      _
    // Predicated region
    $region66: #{tpu_custom_call.1} parent=1 // pred_check
      _
    $region67: #{tpu_custom_call.1} parent=1 // pred_check_branch
      %124 = sbr.rel (0) target = $region69
    $region68: #{tpu_custom_call.1} parent=1 // pred_region
      %126 = dma.done [#allocation13], 128
    $region69: #{tpu_custom_call.1} parent=1 // pred_fallthru
      _
    %v127 = vld [vmem:[%s0] sm:$0xff]
    %v128 = vld [vmem:[#allocation3] sm:$0xff]
    %v129 = vld [vmem:[#allocation6] sm:$0xff]
    %v130 = vld [vmem:[#allocation8] sm:$0xff]
    %v131 = vld [vmem:[#allocation8 + $0x8] sm:$0xff]
    %v132 = vld [vmem:[#allocation8 + $0x10] sm:$0xff]
    %v133 = vld [vmem:[#allocation8 + $0x18] sm:$0xff]
    %v134 = vld [vmem:[%s4] sm:$0x1]
    %v136 = vperm.slane %v134, 0
    %vm138 = vcmask 261120
    %v140 = vsel %vm138, %v127, 0
    %142 = vmatpush.msra.mxu0 0.0
    %143 = vmatpush.msra.mxu0 0.0
    %144 = vmatpush.msra.mxu0 0.0
    %145 = vmatpush.msra.mxu0 0.0
    %146 = vmatpush.msra.mxu0 0.0
    %147 = vmatpush.msra.mxu0 0.0
    %148 = vmatpush.msra.mxu0 0.0
    %149 = vmatpush.msra.mxu0 0.0
    %150 = vmatpush.msra.mxu0 0.0
    %151 = vmatpush.msra.mxu0 0.0
    %152 = vmatpush.msra.mxu0 0.0
    %153 = vmatpush.msra.mxu0 0.0
    %154 = vmatpush.msra.mxu0 %v133
    %155 = vmatpush.msra.mxu0 %v132
    %156 = vmatpush.msra.mxu0 %v131
    %157 = vmatpush.msra.mxu0 %v130
    %158 = vmatmul.f32.gmra.mxu0 %v140
    %v159 = vpop.f32.mrf.mxu0
    %v160 = vadd.f32 %v136, %v159
    %161 = vdwg.mxu0
    %v162 = vld [vmem:[#allocation9] sm:$0xff]
    %v163 = vld [vmem:[#allocation9 + $0x8] sm:$0xff]
    %v164 = vld [vmem:[#allocation9 + $0x10] sm:$0xff]
    %v165 = vld [vmem:[#allocation9 + $0x18] sm:$0xff]
    %v166 = vld [vmem:[%s6] sm:$0x1]
    %v168 = vperm.slane %v166, 0
    %v171 = vsel %vm138, %v128, 0
    %173 = vmatpush.msra.mxu0 0.0
    %174 = vmatpush.msra.mxu0 0.0
    %175 = vmatpush.msra.mxu0 0.0
    %176 = vmatpush.msra.mxu0 0.0
    %177 = vmatpush.msra.mxu0 0.0
    %178 = vmatpush.msra.mxu0 0.0
    %179 = vmatpush.msra.mxu0 0.0
    %180 = vmatpush.msra.mxu0 0.0
    %181 = vmatpush.msra.mxu0 0.0
    %182 = vmatpush.msra.mxu0 0.0
    %183 = vmatpush.msra.mxu0 0.0
    %184 = vmatpush.msra.mxu0 0.0
    %185 = vmatpush.msra.mxu0 %v165
    %186 = vmatpush.msra.mxu0 %v164
    %187 = vmatpush.msra.mxu0 %v163
    %188 = vmatpush.msra.mxu0 %v162
    %189 = vmatmul.f32.gmra.mxu0 %v171
    %v190 = vpop.f32.mrf.mxu0
    %v191 = vadd.f32 %v168, %v190
    %192 = vdwg.mxu0
    %v193 = vld [vmem:[#allocation11] sm:$0xff]
    %v194 = vld [vmem:[#allocation11 + $0x8] sm:$0xff]
    %v195 = vld [vmem:[#allocation11 + $0x10] sm:$0xff]
    %v196 = vld [vmem:[#allocation11 + $0x18] sm:$0xff]
    %v197 = vld [vmem:[%s8] sm:$0x1]
    %v199 = vperm.slane %v197, 0
    %v202 = vsel %vm138, %v129, 0
    %204 = vmatpush.msra.mxu0 0.0
    %205 = vmatpush.msra.mxu0 0.0
    %206 = vmatpush.msra.mxu0 0.0
    %207 = vmatpush.msra.mxu0 0.0
    %208 = vmatpush.msra.mxu0 0.0
    %209 = vmatpush.msra.mxu0 0.0
    %210 = vmatpush.msra.mxu0 0.0
    %211 = vmatpush.msra.mxu0 0.0
    %212 = vmatpush.msra.mxu0 0.0
    %213 = vmatpush.msra.mxu0 0.0
    %214 = vmatpush.msra.mxu0 0.0
    %215 = vmatpush.msra.mxu0 0.0
    %216 = vmatpush.msra.mxu0 %v196
    %217 = vmatpush.msra.mxu0 %v195
    %218 = vmatpush.msra.mxu0 %v194
    %219 = vmatpush.msra.mxu0 %v193
    %220 = vmatmul.f32.gmra.mxu0 %v202
    %v221 = vpop.f32.mrf.mxu0
    %v222 = vadd.f32 %v199, %v221
    %223 = vdwg.mxu0
    %v224 = vmul.f32 %v160, 0.35355338
    %v226 = vsel %vm138, %v224, 0
    %v229 = vsel %vm138, %v191, 0
    %231 = vmatpush.xpose.msra.mxu0 0.0
    %232 = vmatpush.xpose.msra.mxu0 0.0
    %233 = vmatpush.xpose.msra.mxu0 0.0
    %234 = vmatpush.xpose.msra.mxu0 0.0
    %235 = vmatpush.xpose.msra.mxu0 0.0
    %236 = vmatpush.xpose.msra.mxu0 0.0
    %237 = vmatpush.xpose.msra.mxu0 0.0
    %238 = vmatpush.xpose.msra.mxu0 0.0
    %239 = vmatpush.xpose.msra.mxu0 0.0
    %240 = vmatpush.xpose.msra.mxu0 0.0
    %241 = vmatpush.xpose.msra.mxu0 0.0
    %242 = vmatpush.xpose.msra.mxu0 0.0
    %243 = vmatpush.xpose.msra.mxu0 0.0
    %244 = vmatpush.xpose.msra.mxu0 0.0
    %245 = vmatpush.xpose.msra.mxu0 0.0
    %246 = vmatpush.xpose.msra.mxu0 %v229
    %247 = vmatmul.f32.gmra.mxu0 %v226
    %v248 = vpop.f32.mrf.mxu0
    %v249 = vadd.f32 0.0, %v248
    %250 = vdwg.mxu0
    %vm251 = vcmask 64512
    %v252 = vsel %vm251, %v249, -inf
    %253 = vmax.xlane.f32.xlu0 %v252
    %v254 = vpop.xlane.xlu0 %253
    %v255 = vsub.f32 %v249, %v254
    %v256 = vmul.f32 %v255, 1.442695
    %v257 = vpow.pop %v256
    %v258 = vsel %vm251, %v257, 0.0
    %259 = vadd.xlane.f32.xlu0 %v258
    %v260 = vpop.xlane.xlu0 %259
    %v261 = vrcp.pop %v260
    %v262 = vmul.f32 %v260, %v261
    %v263 = vsub.f32 1.0, %v262
    %v264 = vmul.f32 %v261, %v263
    %v265 = vadd.f32 %v261, %v264
    %vm266 = vweird.f32 %v260
    %vm267 = vweird.f32 %v261
    %vm268 = vmor %vm266, %vm267
    %v269 = vsel %vm268, %v261, %v265
    %v270 = vand.u32 2147483647, %v260
    %vm271 = vcmp.eq.f32.partialorder %v270, 8.507059e+37
    %v272 = vand.u32 %v260, 2147483648
    %v273 = vor.u32 1.1754944e-38, %v272
    %v274 = vsel %vm271, %v273, %v269
    %v275 = vmul.f32 %v257, %v274
    %v277 = vsel %vm251, %v275, 0
    %279 = vmatpush.msra.mxu0 0.0
    %280 = vmatpush.msra.mxu0 0.0
    %281 = vmatpush.msra.mxu0 0.0
    %282 = vmatpush.msra.mxu0 0.0
    %283 = vmatpush.msra.mxu0 0.0
    %284 = vmatpush.msra.mxu0 0.0
    %285 = vmatpush.msra.mxu0 0.0
    %286 = vmatpush.msra.mxu0 0.0
    %287 = vmatpush.msra.mxu0 0.0
    %288 = vmatpush.msra.mxu0 0.0
    %289 = vmatpush.msra.mxu0 0.0
    %290 = vmatpush.msra.mxu0 0.0
    %291 = vmatpush.msra.mxu0 0.0
    %292 = vmatpush.msra.mxu0 0.0
    %293 = vmatpush.msra.mxu0 0.0
    %294 = vmatpush.msra.mxu0 %v222
    %295 = vmatmul.f32.gmra.mxu0 %v277
    %v296 = vpop.f32.mrf.mxu0
    %v297 = vadd.f32 0.0, %v296
    %298 = vdwg.mxu0
    %299 = vst.msk [vmem:[#allocation2] sm:$0xff] %vm138, %v297
    %300 = vrot.lane.b32.xlu0 %v224, 96
    %v301 = vpop.permute.xlu0 %300
    %302 = vrot.lane.b32.xlu0 %v191, 96
    %v303 = vpop.permute.xlu0 %302
    %v304 = vsel %vm138, %v301, 0
    %v306 = vsel %vm138, %v303, 0
    %308 = vmatpush.xpose.msra.mxu0 0.0
    %309 = vmatpush.xpose.msra.mxu0 0.0
    %310 = vmatpush.xpose.msra.mxu0 0.0
    %311 = vmatpush.xpose.msra.mxu0 0.0
    %312 = vmatpush.xpose.msra.mxu0 0.0
    %313 = vmatpush.xpose.msra.mxu0 0.0
    %314 = vmatpush.xpose.msra.mxu0 0.0
    %315 = vmatpush.xpose.msra.mxu0 0.0
    %316 = vmatpush.xpose.msra.mxu0 0.0
    %317 = vmatpush.xpose.msra.mxu0 0.0
    %318 = vmatpush.xpose.msra.mxu0 0.0
    %319 = vmatpush.xpose.msra.mxu0 0.0
    %320 = vmatpush.xpose.msra.mxu0 0.0
    %321 = vmatpush.xpose.msra.mxu0 0.0
    %322 = vmatpush.xpose.msra.mxu0 0.0
    %323 = vmatpush.xpose.msra.mxu0 %v306
    %324 = vmatmul.f32.gmra.mxu0 %v304
    %v325 = vpop.f32.mrf.mxu0
    %v326 = vadd.f32 0.0, %v325
    %327 = vdwg.mxu0
    %v328 = vsel %vm251, %v326, -inf
    %329 = vmax.xlane.f32.xlu0 %v328
    %v330 = vpop.xlane.xlu0 %329
    %v331 = vsub.f32 %v326, %v330
    %v332 = vmul.f32 %v331, 1.442695
    %v333 = vpow.pop %v332
    %v334 = vsel %vm251, %v333, 0.0
    %335 = vadd.xlane.f32.xlu0 %v334
    %v336 = vpop.xlane.xlu0 %335
    %v337 = vrcp.pop %v336
    %v338 = vmul.f32 %v336, %v337
    %v339 = vsub.f32 1.0, %v338
    %v340 = vmul.f32 %v337, %v339
    %v341 = vadd.f32 %v337, %v340
    %vm342 = vweird.f32 %v336
    %vm343 = vweird.f32 %v337
    %vm344 = vmor %vm342, %vm343
    %v345 = vsel %vm344, %v337, %v341
    %v346 = vand.u32 2147483647, %v336
    %vm347 = vcmp.eq.f32.partialorder %v346, 8.507059e+37
    %v348 = vand.u32 %v336, 2147483648
    %v349 = vor.u32 1.1754944e-38, %v348
    %v350 = vsel %vm347, %v349, %v345
    %v351 = vmul.f32 %v333, %v350
    %353 = vrot.lane.b32.xlu0 %v222, 96
    %v354 = vpop.permute.xlu0 %353
    %v357 = vsel %vm251, %v351, 0
    %359 = vmatpush.msra.mxu0 0.0
    %360 = vmatpush.msra.mxu0 0.0
    %361 = vmatpush.msra.mxu0 0.0
    %362 = vmatpush.msra.mxu0 0.0
    %363 = vmatpush.msra.mxu0 0.0
    %364 = vmatpush.msra.mxu0 0.0
    %365 = vmatpush.msra.mxu0 0.0
    %366 = vmatpush.msra.mxu0 0.0
    %367 = vmatpush.msra.mxu0 0.0
    %368 = vmatpush.msra.mxu0 0.0
    %369 = vmatpush.msra.mxu0 0.0
    %370 = vmatpush.msra.mxu0 0.0
    %371 = vmatpush.msra.mxu0 0.0
    %372 = vmatpush.msra.mxu0 0.0
    %373 = vmatpush.msra.mxu0 0.0
    %374 = vmatpush.msra.mxu0 %v354
    %375 = vmatmul.f32.gmra.mxu0 %v357
    %v376 = vpop.f32.mrf.mxu0
    %v377 = vadd.f32 0.0, %v376
    %378 = vdwg.mxu0
    %379 = vst.msk [vmem:[#allocation2 + $0x8] sm:$0xff] %vm138, %v377
    %380 = vrot.lane.b32.xlu0 %v224, 64
    %v381 = vpop.permute.xlu0 %380
    %382 = vrot.lane.b32.xlu0 %v191, 64
    %v383 = vpop.permute.xlu0 %382
    %v384 = vsel %vm138, %v381, 0
    %v386 = vsel %vm138, %v383, 0
    %388 = vmatpush.xpose.msra.mxu0 0.0
    %389 = vmatpush.xpose.msra.mxu0 0.0
    %390 = vmatpush.xpose.msra.mxu0 0.0
    %391 = vmatpush.xpose.msra.mxu0 0.0
    %392 = vmatpush.xpose.msra.mxu0 0.0
    %393 = vmatpush.xpose.msra.mxu0 0.0
    %394 = vmatpush.xpose.msra.mxu0 0.0
    %395 = vmatpush.xpose.msra.mxu0 0.0
    %396 = vmatpush.xpose.msra.mxu0 0.0
    %397 = vmatpush.xpose.msra.mxu0 0.0
    %398 = vmatpush.xpose.msra.mxu0 0.0
    %399 = vmatpush.xpose.msra.mxu0 0.0
    %400 = vmatpush.xpose.msra.mxu0 0.0
    %401 = vmatpush.xpose.msra.mxu0 0.0
    %402 = vmatpush.xpose.msra.mxu0 0.0
    %403 = vmatpush.xpose.msra.mxu0 %v386
    %404 = vmatmul.f32.gmra.mxu0 %v384
    %v405 = vpop.f32.mrf.mxu0
    %v406 = vadd.f32 0.0, %v405
    %407 = vdwg.mxu0
    %v408 = vsel %vm251, %v406, -inf
    %409 = vmax.xlane.f32.xlu0 %v408
    %v410 = vpop.xlane.xlu0 %409
    %v411 = vsub.f32 %v406, %v410
    %v412 = vmul.f32 %v411, 1.442695
    %v413 = vpow.pop %v412
    %v414 = vsel %vm251, %v413, 0.0
    %415 = vadd.xlane.f32.xlu0 %v414
    %v416 = vpop.xlane.xlu0 %415
    %v417 = vrcp.pop %v416
    %v418 = vmul.f32 %v416, %v417
    %v419 = vsub.f32 1.0, %v418
    %v420 = vmul.f32 %v417, %v419
    %v421 = vadd.f32 %v417, %v420
    %vm422 = vweird.f32 %v416
    %vm423 = vweird.f32 %v417
    %vm424 = vmor %vm422, %vm423
    %v425 = vsel %vm424, %v417, %v421
    %v426 = vand.u32 2147483647, %v416
    %vm427 = vcmp.eq.f32.partialorder %v426, 8.507059e+37
    %v428 = vand.u32 %v416, 2147483648
    %v429 = vor.u32 1.1754944e-38, %v428
    %v430 = vsel %vm427, %v429, %v425
    %v431 = vmul.f32 %v413, %v430
    %432 = vrot.lane.b32.xlu0 %v222, 64
    %v433 = vpop.permute.xlu0 %432
    %v436 = vsel %vm251, %v431, 0
    %438 = vmatpush.msra.mxu0 0.0
    %439 = vmatpush.msra.mxu0 0.0
    %440 = vmatpush.msra.mxu0 0.0
    %441 = vmatpush.msra.mxu0 0.0
    %442 = vmatpush.msra.mxu0 0.0
    %443 = vmatpush.msra.mxu0 0.0
    %444 = vmatpush.msra.mxu0 0.0
    %445 = vmatpush.msra.mxu0 0.0
    %446 = vmatpush.msra.mxu0 0.0
    %447 = vmatpush.msra.mxu0 0.0
    %448 = vmatpush.msra.mxu0 0.0
    %449 = vmatpush.msra.mxu0 0.0
    %450 = vmatpush.msra.mxu0 0.0
    %451 = vmatpush.msra.mxu0 0.0
    %452 = vmatpush.msra.mxu0 0.0
    %453 = vmatpush.msra.mxu0 %v433
    %454 = vmatmul.f32.gmra.mxu0 %v436
    %v455 = vpop.f32.mrf.mxu0
    %v456 = vadd.f32 0.0, %v455
    %457 = vdwg.mxu0
    %458 = vst.msk [vmem:[#allocation2 + $0x10] sm:$0xff] %vm138, %v456
    %459 = vrot.lane.b32.xlu0 %v224, 32
    %v460 = vpop.permute.xlu0 %459
    %461 = vrot.lane.b32.xlu0 %v191, 32
    %v462 = vpop.permute.xlu0 %461
    %v463 = vsel %vm138, %v460, 0
    %v465 = vsel %vm138, %v462, 0
    %467 = vmatpush.xpose.msra.mxu0 0.0
    %468 = vmatpush.xpose.msra.mxu0 0.0
    %469 = vmatpush.xpose.msra.mxu0 0.0
    %470 = vmatpush.xpose.msra.mxu0 0.0
    %471 = vmatpush.xpose.msra.mxu0 0.0
    %472 = vmatpush.xpose.msra.mxu0 0.0
    %473 = vmatpush.xpose.msra.mxu0 0.0
    %474 = vmatpush.xpose.msra.mxu0 0.0
    %475 = vmatpush.xpose.msra.mxu0 0.0
    %476 = vmatpush.xpose.msra.mxu0 0.0
    %477 = vmatpush.xpose.msra.mxu0 0.0
    %478 = vmatpush.xpose.msra.mxu0 0.0
    %479 = vmatpush.xpose.msra.mxu0 0.0
    %480 = vmatpush.xpose.msra.mxu0 0.0
    %481 = vmatpush.xpose.msra.mxu0 0.0
    %482 = vmatpush.xpose.msra.mxu0 %v465
    %483 = vmatmul.f32.gmra.mxu0 %v463
    %v484 = vpop.f32.mrf.mxu0
    %v485 = vadd.f32 0.0, %v484
    %486 = vdwg.mxu0
    %v487 = vsel %vm251, %v485, -inf
    %488 = vmax.xlane.f32.xlu0 %v487
    %v489 = vpop.xlane.xlu0 %488
    %v490 = vsub.f32 %v485, %v489
    %v491 = vmul.f32 %v490, 1.442695
    %v492 = vpow.pop %v491
    %v493 = vsel %vm251, %v492, 0.0
    %494 = vadd.xlane.f32.xlu0 %v493
    %v495 = vpop.xlane.xlu0 %494
    %v496 = vrcp.pop %v495
    %v497 = vmul.f32 %v495, %v496
    %v498 = vsub.f32 1.0, %v497
    %v499 = vmul.f32 %v496, %v498
    %v500 = vadd.f32 %v496, %v499
    %vm501 = vweird.f32 %v495
    %vm502 = vweird.f32 %v496
    %vm503 = vmor %vm501, %vm502
    %v504 = vsel %vm503, %v496, %v500
    %v505 = vand.u32 2147483647, %v495
    %vm506 = vcmp.eq.f32.partialorder %v505, 8.507059e+37
    %v507 = vand.u32 %v495, 2147483648
    %v508 = vor.u32 1.1754944e-38, %v507
    %v509 = vsel %vm506, %v508, %v504
    %v510 = vmul.f32 %v492, %v509
    %511 = vrot.lane.b32.xlu0 %v222, 32
    %v512 = vpop.permute.xlu0 %511
    %v515 = vsel %vm251, %v510, 0
    %517 = vmatpush.msra.mxu0 0.0
    %518 = vmatpush.msra.mxu0 0.0
    %519 = vmatpush.msra.mxu0 0.0
    %520 = vmatpush.msra.mxu0 0.0
    %521 = vmatpush.msra.mxu0 0.0
    %522 = vmatpush.msra.mxu0 0.0
    %523 = vmatpush.msra.mxu0 0.0
    %524 = vmatpush.msra.mxu0 0.0
    %525 = vmatpush.msra.mxu0 0.0
    %526 = vmatpush.msra.mxu0 0.0
    %527 = vmatpush.msra.mxu0 0.0
    %528 = vmatpush.msra.mxu0 0.0
    %529 = vmatpush.msra.mxu0 0.0
    %530 = vmatpush.msra.mxu0 0.0
    %531 = vmatpush.msra.mxu0 0.0
    %532 = vmatpush.msra.mxu0 %v512
    %533 = vmatmul.f32.gmra.mxu0 %v515
    %v534 = vpop.f32.mrf.mxu0
    %v535 = vadd.f32 0.0, %v534
    %536 = vdwg.mxu0
    %537 = vst.msk [vmem:[#allocation2 + $0x18] sm:$0xff] %vm138, %v535
    %v538 = vld [vmem:[#allocation12] sm:$0xff]
    %v539 = vld [vmem:[#allocation2] sm:$0xff]
    %v540 = vld [vmem:[#allocation2 + $0x8] sm:$0xff]
    %v541 = vld [vmem:[#allocation2 + $0x10] sm:$0xff]
    %v542 = vld [vmem:[#allocation2 + $0x18] sm:$0xff]
    %v543 = vld [vmem:[%s10] sm:$0xff]
    %545 = vset.pattern.permute.xlu0 0
    %546 = vperm.xlu0 %545, %v543
    %v547 = vpop.permute.xlu0 %546
    %v550 = vsel %vm138, %v538, 0
    %552 = vmatpush.msra.mxu0 0.0
    %553 = vmatpush.msra.mxu0 0.0
    %554 = vmatpush.msra.mxu0 0.0
    %555 = vmatpush.msra.mxu0 0.0
    %556 = vmatpush.msra.mxu0 0.0
    %557 = vmatpush.msra.mxu0 0.0
    %558 = vmatpush.msra.mxu0 0.0
    %559 = vmatpush.msra.mxu0 0.0
    %560 = vmatpush.msra.mxu0 0.0
    %561 = vmatpush.msra.mxu0 0.0
    %562 = vmatpush.msra.mxu0 0.0
    %563 = vmatpush.msra.mxu0 0.0
    %564 = vmatpush.msra.mxu0 %v542
    %565 = vmatpush.msra.mxu0 %v541
    %566 = vmatpush.msra.mxu0 %v540
    %567 = vmatpush.msra.mxu0 %v539
    %568 = vmatmul.f32.gmra.mxu0 %v550
    %v569 = vpop.f32.mrf.mxu0
    %v570 = vadd.f32 %v547, %v569
    %571 = vdwg.mxu0
    %v572 = vadd.f32 %v570, %v129
    %v573 = vsel %vm138, %v572, 0.0
    %574 = vadd.xlane.f32.xlu0 %v573
    %v575 = vpop.xlane.xlu0 %574
    %v576 = vrcp.pop 32.0
    %v577 = vmul.f32 32.0, %v576
    %v578 = vsub.f32 1.0, %v577
    %v579 = vmul.f32 %v576, %v578
    %v580 = vadd.f32 %v576, %v579
    %vm581 = vweird.f32 %v576
    %v582 = vsel %vm581, %v576, %v580
    %v583 = vmul.f32 %v575, %v582
    %v584 = vsub.f32 %v572, %v583
    %v585 = vmul.f32 %v584, %v584
    %v586 = vsel %vm138, %v585, 0.0
    %587 = vadd.xlane.f32.xlu0 %v586
    %v588 = vpop.xlane.xlu0 %587
    %v589 = vmul.f32 %v588, %v582
    %v590 = vadd.f32 %v589, 0.0001
    %v591 = vrsqrt.pop %v590
    %v592 = vmul.f32 %v591, %v590
    %v593 = vmul.f32 %v592, %v591
    %v594 = vmul.f32 0.5, %v593
    %v595 = vsub.f32 1.5, %v594
    %v596 = vmul.f32 %v591, %v595
    %vm597 = vweird.f32 %v590
    %vm598 = vweird.f32 %v591
    %vm599 = vmor %vm597, %vm598
    %v600 = vsel %vm599, %v591, %v596
    %v601 = vmul.f32 %v584, %v600
    %602 = vst.msk [vmem:[#allocation14] sm:$0xff] %vm138, %v601
    // Predicated region
    $region70: #{tpu_custom_call.1} parent=1 // pred_check
      _
    $region71: #{tpu_custom_call.1} parent=1 // pred_check_branch
      %604 = sbr.rel (0) target = $region73
    $region72: #{tpu_custom_call.1} parent=1 // pred_region
      %606 = vsyncadd [#allocation5], 0
      %s608 = sshll.u32 [#allocation14], 4
      %s609 = int_to_ptr.vmem [resolvable:$true] %s608
      %s610 = sshll.u32 %s11, 4
      %s611 = int_to_ptr.hbm [resolvable:$true] %s610
      %613 = dma.vmem_to_hbm [thread:$0]  %s609, 128, %s611, [#allocation5]
    $region73: #{tpu_custom_call.1} parent=1 // pred_fallthru
      _
    // Predicated region
    $region74: #{tpu_custom_call.1} parent=1 // pred_check
      _
    $region75: #{tpu_custom_call.1} parent=1 // pred_check_branch
      %615 = sbr.rel (0) target = $region77
    $region76: #{tpu_custom_call.1} parent=1 // pred_region
      %617 = dma.done [#allocation5], 128
    $region77: #{tpu_custom_call.1} parent=1 // pred_fallthru
      _
    %618 = vsyncpa [#allocation4], 1
    %619 = vsyncpa [#allocation7], 1
    %620 = vsyncpa [#allocation10], 1
    %621 = vsyncpa [#allocation13], 1
    %622 = vsyncpa [#allocation5], 1

</llo_original>
